<compile_context>
chip_gen: v7x
topology: tpu7x:2x2x1
jax: 0.10.0
libtpu: 0.0.40
codegen_flags: <defaults>
</compile_context>

<pallas_src>
import functools

import jax
import jax.numpy as jnp
from jax.experimental import pallas as pl
from jax.experimental.pallas import tpu as pltpu


def _ce_smooth_kernel(preds_ref, tgt_ref, out_ref):
    """Per-row CE (ignore_index=-1) and -sum_j log_softmax, lane-dense output.

    preds_ref: (tb, C) float ; tgt_ref: (1, tb) int32 ; out_ref: (2, tb) f32.
    """
    logits = preds_ref[...].astype(jnp.float32)                   # (tb, C)
    tgt_col = jnp.transpose(tgt_ref[...])                         # (1,tb)->(tb,1) small XLU relayout

    # Plain reductions first (VPU/XLU) so they co-issue under the exp pass.
    row_sum = jnp.sum(logits, axis=-1, keepdims=True)             # (tb, 1)
    col = jax.lax.broadcasted_iota(jnp.int32, (1, logits.shape[-1]), 1)   # (1, C)
    tgt_logit = jnp.sum(jnp.where(col == tgt_col, logits, 0.0),
                        axis=-1, keepdims=True)                   # (tb, 1)

    m = jnp.max(logits, axis=-1, keepdims=True)                   # (tb, 1)
    lse = m + jnp.log(jnp.sum(jnp.exp(logits - m), axis=-1, keepdims=True))

    valid = (tgt_col >= 0).astype(jnp.float32)                    # ignore_index = -1
    ce = (lse - tgt_logit) * valid                                # reduction='none'
    sm = logits.shape[-1] * lse - row_sum                         # -sum_j log_softmax

    # Sublane->lane relayout of the row-reduction results -> unmasked lane-dense stores.
    out_ref[0:1, :] = jnp.transpose(ce)                           # (1, tb)
    out_ref[1:2, :] = jnp.transpose(sm)                           # (1, tb)


def _choose_tile_rows(B, C, itemsize):
    """Lane-dense batch tile: multiple of 128, ~8 MiB of preds per block
    (16 MiB double-buffered), capped near B//2 so the parallel grid axis has
    >= 2 blocks for v7x's two TensorCores.  B <= 128 -> one full block."""
    if B <= 128:
        return B
    budget_bytes = 8 * 1024 * 1024
    tb = budget_bytes // (C * itemsize)
    tb = min(tb, 8192)                                # keep Mosaic IR size sane
    tb = min(tb, max(128, ((B // 2) // 128) * 128))   # >= 2 blocks when possible
    tb = max(128, (tb // 128) * 128)
    # TODO(synk): for 128*C*itemsize >> 8 MiB (very large class counts) the
    # 128-row minimum overshoots the budget; would need a C-tiled variant.
    return tb


def _per_sample_terms(preds, targets, tile_rows=None):
    B, C = preds.shape
    itemsize = jnp.dtype(preds.dtype).itemsize
    if tile_rows is None:
        tb = _choose_tile_rows(B, C, itemsize)
    else:
        tb = B if tile_rows >= B else max(128, (tile_rows // 128) * 128)

    tgt_row = targets.reshape(1, B).astype(jnp.int32)             # lane-dense targets

    cost = pl.CostEstimate(
        flops=6 * B * C,
        transcendentals=B * C,
        bytes_accessed=B * C * itemsize + B * 4 + 2 * B * 4)

    out = pl.pallas_call(
        _ce_smooth_kernel,
        out_shape=jax.ShapeDtypeStruct((2, B), jnp.float32),      # fused ce/sm slab
        grid=(pl.cdiv(B, tb),),                                   # tail block padded, OOB discarded
        in_specs=[pl.BlockSpec((tb, C), lambda i: (i, 0)),
                  pl.BlockSpec((1, tb), lambda i: (0, i))],
        out_specs=pl.BlockSpec((2, tb), lambda i: (0, i)),
        compiler_params=pltpu.CompilerParams(
            dimension_semantics=("parallel",),                    # megacore-shardable on v7x
            vmem_limit_bytes=32 * 1024 * 1024),
        cost_estimate=cost,
    )(preds, tgt_row)
    return out[0], out[1]


@functools.partial(jax.jit, static_argnames=("ohem_rate", "ls_eps", "tile_rows"))
def ohem_cross_entropy(preds, targets, ohem_rate=0.9, ls_eps=0.1, tile_rows=None):
    """Matches OHEMCrossEntropy.forward with reduction='mean', class_weights=None."""
    B, C = preds.shape
    ce, sm = _per_sample_terms(preds, targets, tile_rows)

    keep_num = max(1, min(B, int(B * ohem_rate)))   # guard against keep_num == 0
    # TODO(synk): descending sort / OHEM selection has no clean Pallas TPU
    # primitive; it stays in XLA glue via lax.top_k.
    top_ce, keep_ids = jax.lax.top_k(ce, keep_num)
    nll = jnp.mean(top_ce)                           # F.nll_loss(..., reduction='mean')
    smooth = jnp.mean(sm[keep_ids])                  # mean of -log_preds.sum(-1)
    return ls_eps * (smooth / C) + (1.0 - ls_eps) * nll


def _reference(preds, targets, ohem_rate=0.9, ls_eps=0.1):
    """Pure-JAX reference replicating the PyTorch forward."""
    B, C = preds.shape
    logp = jax.nn.log_softmax(preds.astype(jnp.float32), axis=-1)
    ce = -jnp.take_along_axis(logp, jnp.maximum(targets, 0)[:, None], axis=-1)[:, 0]
    ce = jnp.where(targets >= 0, ce, 0.0)
    keep_num = max(1, min(B, int(B * ohem_rate)))
    _, idx = jax.lax.top_k(ce, keep_num)
    lp_k = logp[idx]
    t_k = targets[idx]
    smooth = jnp.mean(-jnp.sum(lp_k, axis=-1))
    nll = jnp.mean(-jnp.take_along_axis(lp_k, t_k[:, None], axis=-1)[:, 0])
    return ls_eps * (smooth / C) + (1.0 - ls_eps) * nll


if __name__ == "__main__":
    key = jax.random.PRNGKey(0)
    k1, k2, k3, k4, k5, k6 = jax.random.split(key, 6)

    # Case 1: small shapes, single full-array block (lane dim == B < 128).
    B1, C1 = 32, 8
    preds1 = jax.random.normal(k1, (B1, C1), dtype=jnp.float32)
    targets1 = jax.random.randint(k2, (B1,), 0, C1, dtype=jnp.int32)
    out1 = jax.block_until_ready(ohem_cross_entropy(preds1, targets1))
    ref1 = _reference(preds1, targets1)
    assert jnp.allclose(out1, ref1, rtol=1e-4, atol=1e-4), (float(out1), float(ref1))

    # Case 2: multi-block grid, partial tail block, ignore_index rows.
    B2, C2 = 250, 40
    preds2 = jax.random.normal(k3, (B2, C2), dtype=jnp.float32)
    targets2 = jax.random.randint(k4, (B2,), 0, C2, dtype=jnp.int32)
    targets2 = targets2.at[5].set(-1).at[100].set(-1)
    out2 = jax.block_until_ready(ohem_cross_entropy(preds2, targets2, tile_rows=128))
    ref2 = _reference(preds2, targets2)
    assert jnp.allclose(out2, ref2, rtol=1e-4, atol=1e-4), (float(out2), float(ref2))

    # Case 3: bf16 preds (halves HBM read traffic on v5e/v6e), auto tiling -> 2 blocks.
    B3, C3 = 256, 64
    preds3 = jax.random.normal(k5, (B3, C3), dtype=jnp.float32).astype(jnp.bfloat16)
    targets3 = jax.random.randint(k6, (B3,), 0, C3, dtype=jnp.int32)
    out3 = jax.block_until_ready(ohem_cross_entropy(preds3, targets3))
    ref3 = _reference(preds3, targets3)
    assert jnp.allclose(out3, ref3, rtol=1e-3, atol=1e-3), (float(out3), float(ref3))

    print("KERNEL_OK")
</pallas_src>

<mosaic_0001>
module attributes {stable_mosaic.version = 11 : i64} {
  func.func @_ce_smooth_kernel(%arg0: i32, %arg1: memref<32x8xf32, #tpu.memory_space<vmem>>, %arg2: memref<1x32xi32, #tpu.memory_space<vmem>>, %arg3: memref<2x32xf32, #tpu.memory_space<vmem>>) attributes {dimension_semantics = [#tpu.dimension_semantics<parallel>], iteration_bounds = array<i64: 1>, scalar_prefetch = 0 : i64, scratch_operands = 0 : i64, tpu.core_type = #tpu.core_type<tc>, window_params = [{transform_indices = @transform_0, window_bounds = array<i64: 32, 8>}, {transform_indices = @transform_1, window_bounds = array<i64: 1, 32>}, {transform_indices = @transform_2, window_bounds = array<i64: 2, 32>}]} {
    %c0 = arith.constant 0 : index
    %c0_0 = arith.constant 0 : index
    %0 = vector.load %arg1[%c0, %c0_0] : memref<32x8xf32, #tpu.memory_space<vmem>>, vector<32x8xf32>
    %c0_1 = arith.constant 0 : index
    %c0_2 = arith.constant 0 : index
    %1 = vector.load %arg2[%c0_1, %c0_2] : memref<1x32xi32, #tpu.memory_space<vmem>>, vector<1x32xi32>
    %2 = tpu.transpose %1, [1, 0] : vector<1x32xi32> -> vector<32x1xi32>
    %cst = arith.constant dense<0.000000e+00> : vector<32xf32>
    %3 = vector.multi_reduction <add>, %0, %cst [1] : vector<32x8xf32> to vector<32xf32>
    %4 = vector.shape_cast %3 : vector<32xf32> to vector<32x1xf32>
    %5 = tpu.iota {dimensions = array<i32: 1>} : vector<1x8xi32>
    %6 = vector.broadcast %5 : vector<1x8xi32> to vector<32x8xi32>
    %7 = vector.broadcast %2 : vector<32x1xi32> to vector<32x8xi32>
    %8 = arith.cmpi eq, %6, %7 : vector<32x8xi32>
    %cst_3 = arith.constant 0.000000e+00 : f32
    %9 = vector.broadcast %cst_3 : f32 to vector<32x8xf32>
    %10 = arith.select %8, %0, %9 : vector<32x8xi1>, vector<32x8xf32>
    %cst_4 = arith.constant dense<0.000000e+00> : vector<32xf32>
    %11 = vector.multi_reduction <add>, %10, %cst_4 [1] : vector<32x8xf32> to vector<32xf32>
    %12 = vector.shape_cast %11 : vector<32xf32> to vector<32x1xf32>
    %cst_5 = arith.constant dense<0xFF800000> : vector<32xf32>
    %13 = vector.multi_reduction <maximumf>, %0, %cst_5 [1] : vector<32x8xf32> to vector<32xf32>
    %14 = vector.shape_cast %13 : vector<32xf32> to vector<32x1xf32>
    %15 = vector.broadcast %14 : vector<32x1xf32> to vector<32x8xf32>
    %16 = arith.subf %0, %15 : vector<32x8xf32>
    %17 = math.exp %16 : vector<32x8xf32>
    %cst_6 = arith.constant dense<0.000000e+00> : vector<32xf32>
    %18 = vector.multi_reduction <add>, %17, %cst_6 [1] : vector<32x8xf32> to vector<32xf32>
    %19 = vector.shape_cast %18 : vector<32xf32> to vector<32x1xf32>
    %20 = math.log %19 : vector<32x1xf32>
    %21 = arith.addf %14, %20 : vector<32x1xf32>
    %c0_i32 = arith.constant 0 : i32
    %22 = vector.broadcast %c0_i32 : i32 to vector<32x1xi32>
    %23 = arith.cmpi sge, %2, %22 : vector<32x1xi32>
    %24 = arith.extui %23 : vector<32x1xi1> to vector<32x1xi32>
    %25 = arith.sitofp %24 : vector<32x1xi32> to vector<32x1xf32>
    %26 = arith.subf %21, %12 : vector<32x1xf32>
    %27 = arith.mulf %26, %25 : vector<32x1xf32>
    %cst_7 = arith.constant 8.000000e+00 : f32
    %28 = vector.broadcast %cst_7 : f32 to vector<32x1xf32>
    %29 = arith.mulf %28, %21 : vector<32x1xf32>
    %30 = arith.subf %29, %4 : vector<32x1xf32>
    %31 = tpu.transpose %27, [1, 0] : vector<32x1xf32> -> vector<1x32xf32>
    %c0_8 = arith.constant 0 : index
    %c0_9 = arith.constant 0 : index
    %32 = vector.load %arg3[%c0_8, %c0_9] : memref<2x32xf32, #tpu.memory_space<vmem>>, vector<1x32xf32>
    tpu.vector_store %arg3[%c0_8, %c0_9], %31 {strides = array<i32>} : memref<2x32xf32, #tpu.memory_space<vmem>>, vector<1x32xf32>,
    %33 = tpu.transpose %30, [1, 0] : vector<32x1xf32> -> vector<1x32xf32>
    %c1 = arith.constant 1 : index
    %c0_10 = arith.constant 0 : index
    %34 = vector.load %arg3[%c1, %c0_10] : memref<2x32xf32, #tpu.memory_space<vmem>>, vector<1x32xf32>
    tpu.vector_store %arg3[%c1, %c0_10], %33 {strides = array<i32>} : memref<2x32xf32, #tpu.memory_space<vmem>>, vector<1x32xf32>,
    return
  }
  func.func @transform_0(%arg0: i32) -> (i32, i32) {
    %c0_i32 = arith.constant 0 : i32
    %c0_i32_0 = arith.constant 0 : i32
    return %arg0, %c0_i32 : i32, i32
  }
  func.func @transform_1(%arg0: i32) -> (i32, i32) {
    %c0_i32 = arith.constant 0 : i32
    %c0_i32_0 = arith.constant 0 : i32
    return %c0_i32, %arg0 : i32, i32
  }
  func.func @transform_2(%arg0: i32) -> (i32, i32) {
    %c0_i32 = arith.constant 0 : i32
    %c0_i32_0 = arith.constant 0 : i32
    return %c0_i32, %arg0 : i32, i32
  }
}

</mosaic_0001>

<llo_original>
// kernel: ohem_cross_entropy.1
$region0: #{ohem_cross_entropy.1}
  #allocation0 [shape = 'u32[]', space=smem, size = 0x4, offset = 0x4, fixed_abs, tag = 'smem constant byte address 0x4 - core index']
  #allocation1 [shape = 'u32[144,128]{1,0:T(1,128)}', space=vmem, size = 0x12000, scoped, tag = 'internal scratch']
  %s0 = inlined_call_operand.vmem [shape: f32[32,8], index: 0, kind: input, shape index: {}]
  %s1 = inlined_call_operand.vmem [shape: s32[1,32], index: 1, kind: input, shape index: {}]
  %s2 = inlined_call_operand.vmem [shape: f32[2,32], index: 2, kind: output, shape index: {}]
  %s3 = sld [smem:[#allocation0]]
  $region18: #{ohem_cross_entropy.1} parent=0
    _
  %s5 = ssub.s32 1, %s3
  %s6 = scalar_select 0, %s5, %s3
  // Predicated region
  $region2: #{ohem_cross_entropy.1} parent=0 // pred_check
    _
  $region3: #{ohem_cross_entropy.1} parent=0 // pred_check_branch
    %8 = sbr.rel (0) target = $region5
  $region4: #{ohem_cross_entropy.1} parent=0 // pred_region
    _
  $region5: #{ohem_cross_entropy.1} parent=0 // pred_fallthru
    _
  // Predicated region
  $region6: #{ohem_cross_entropy.1} parent=0 // pred_check
    _
  $region7: #{ohem_cross_entropy.1} parent=0 // pred_check_branch
    %10 = sbr.rel (0) target = $region9
  $region8: #{ohem_cross_entropy.1} parent=0 // pred_region
    _
  $region9: #{ohem_cross_entropy.1} parent=0 // pred_fallthru
    _
  %v11 = vld [vmem:[%s0] sm:$0xff]
  %v12 = vld [vmem:[%s0 + $0x8] sm:$0xff]
  %v13 = vld [vmem:[%s0 + $0x10] sm:$0xff]
  %v14 = vld [vmem:[%s0 + $0x18] sm:$0xff]
  %v15 = vld [vmem:[%s1] sm:$0x1]
  %16 = vxpose.xlu0.b32.start [1/16] %v15, 128
  %17 = vxpose.xlu0.b32.cont [2/16] 0, 128
  %18 = vxpose.xlu0.b32.cont [3/16] 0, 128
  %19 = vxpose.xlu0.b32.cont [4/16] 0, 128
  %20 = vxpose.xlu0.b32.cont [5/16] 0, 128
  %21 = vxpose.xlu0.b32.cont [6/16] 0, 128
  %22 = vxpose.xlu0.b32.cont [7/16] 0, 128
  %23 = vxpose.xlu0.b32.cont [8/16] 0, 128
  %24 = vxpose.xlu0.b32.cont [9/16] 0, 128
  %25 = vxpose.xlu0.b32.cont [10/16] 0, 128
  %26 = vxpose.xlu0.b32.cont [11/16] 0, 128
  %27 = vxpose.xlu0.b32.cont [12/16] 0, 128
  %28 = vxpose.xlu0.b32.cont [13/16] 0, 128
  %29 = vxpose.xlu0.b32.cont [14/16] 0, 128
  %30 = vxpose.xlu0.b32.cont [15/16] 0, 128
  %31 = vxpose.xlu0.b32.end [16/16] 0, 128
  %v32 = vpop.trf.xlu0
  %v33 = vpop.trf.xlu0
  %v34 = vpop.trf.xlu0
  %v35 = vpop.trf.xlu0
  %v36 = vpop.trf.xlu0
  %v37 = vpop.trf.xlu0
  %v38 = vpop.trf.xlu0
  %v39 = vpop.trf.xlu0
  %v40 = vpop.trf.xlu0
  %v41 = vpop.trf.xlu0
  %v42 = vpop.trf.xlu0
  %v43 = vpop.trf.xlu0
  %v44 = vpop.trf.xlu0
  %v45 = vpop.trf.xlu0
  %v46 = vpop.trf.xlu0
  %v47 = vpop.trf.xlu0
  %vm48 = vcmask 64512
  %v49 = vsel %vm48, %v11, 0.0
  %50 = vadd.xlane.f32.xlu0 %v49
  %v51 = vpop.xlane.xlu0 %50
  %v52 = vsel %vm48, %v12, 0.0
  %53 = vadd.xlane.f32.xlu0 %v52
  %v54 = vpop.xlane.xlu0 %53
  %v55 = vsel %vm48, %v13, 0.0
  %56 = vadd.xlane.f32.xlu0 %v55
  %v57 = vpop.xlane.xlu0 %56
  %v58 = vsel %vm48, %v14, 0.0
  %59 = vadd.xlane.f32.xlu0 %v58
  %v60 = vpop.xlane.xlu0 %59
  %v61 = vlaneseq
  %v62 = vand.u32 %v61, 127
  %63 = vset.pattern.permute.xlu0 0
  %64 = vperm.xlu0 %63, %v32
  %v65 = vpop.permute.xlu0 %64
  %66 = vset.pattern.permute.xlu0 0
  %67 = vperm.xlu0 %66, %v33
  %v68 = vpop.permute.xlu0 %67
  %69 = vset.pattern.permute.xlu0 0
  %70 = vperm.xlu0 %69, %v34
  %v71 = vpop.permute.xlu0 %70
  %72 = vset.pattern.permute.xlu0 0
  %73 = vperm.xlu0 %72, %v35
  %v74 = vpop.permute.xlu0 %73
  %vm75 = vcmp.eq.s32.totalorder %v62, %v65
  %vm76 = vcmp.eq.s32.totalorder %v62, %v68
  %vm77 = vcmp.eq.s32.totalorder %v62, %v71
  %vm78 = vcmp.eq.s32.totalorder %v62, %v74
  %v79 = vsel %vm75, %v11, 0.0
  %v80 = vsel %vm76, %v12, 0.0
  %v81 = vsel %vm77, %v13, 0.0
  %v82 = vsel %vm78, %v14, 0.0
  %v83 = vsel %vm48, %v79, 0.0
  %84 = vadd.xlane.f32.xlu0 %v83
  %v85 = vpop.xlane.xlu0 %84
  %v86 = vsel %vm48, %v80, 0.0
  %87 = vadd.xlane.f32.xlu0 %v86
  %v88 = vpop.xlane.xlu0 %87
  %v89 = vsel %vm48, %v81, 0.0
  %90 = vadd.xlane.f32.xlu0 %v89
  %v91 = vpop.xlane.xlu0 %90
  %v92 = vsel %vm48, %v82, 0.0
  %93 = vadd.xlane.f32.xlu0 %v92
  %v94 = vpop.xlane.xlu0 %93
  %v95 = vsel %vm48, %v11, -inf
  %96 = vmax.xlane.f32.xlu0 %v95
  %v97 = vpop.xlane.xlu0 %96
  %v98 = vsel %vm48, %v12, -inf
  %99 = vmax.xlane.f32.xlu0 %v98
  %v100 = vpop.xlane.xlu0 %99
  %v101 = vsel %vm48, %v13, -inf
  %102 = vmax.xlane.f32.xlu0 %v101
  %v103 = vpop.xlane.xlu0 %102
  %v104 = vsel %vm48, %v14, -inf
  %105 = vmax.xlane.f32.xlu0 %v104
  %v106 = vpop.xlane.xlu0 %105
  %v107 = vsub.f32 %v11, %v97
  %v108 = vsub.f32 %v12, %v100
  %v109 = vsub.f32 %v13, %v103
  %v110 = vsub.f32 %v14, %v106
  %v111 = vmul.f32 %v107, 1.442695
  %v112 = vpow.pop %v111
  %v113 = vmul.f32 %v108, 1.442695
  %v114 = vpow.pop %v113
  %v115 = vmul.f32 %v109, 1.442695
  %v116 = vpow.pop %v115
  %v117 = vmul.f32 %v110, 1.442695
  %v118 = vpow.pop %v117
  %v119 = vsel %vm48, %v112, 0.0
  %120 = vadd.xlane.f32.xlu0 %v119
  %v121 = vpop.xlane.xlu0 %120
  %v122 = vsel %vm48, %v114, 0.0
  %123 = vadd.xlane.f32.xlu0 %v122
  %v124 = vpop.xlane.xlu0 %123
  %v125 = vsel %vm48, %v116, 0.0
  %126 = vadd.xlane.f32.xlu0 %v125
  %v127 = vpop.xlane.xlu0 %126
  %v128 = vsel %vm48, %v118, 0.0
  %129 = vadd.xlane.f32.xlu0 %v128
  %v130 = vpop.xlane.xlu0 %129
  %v131 = vlog2.pop %v121
  %v132 = vmul.f32 %v131, 0.6931472
  %v133 = vlog2.pop %v124
  %v134 = vmul.f32 %v133, 0.6931472
  %v135 = vlog2.pop %v127
  %v136 = vmul.f32 %v135, 0.6931472
  %v137 = vlog2.pop %v130
  %v138 = vmul.f32 %v137, 0.6931472
  %v139 = vadd.f32 %v97, %v132
  %v140 = vadd.f32 %v100, %v134
  %v141 = vadd.f32 %v103, %v136
  %v142 = vadd.f32 %v106, %v138
  %vm143 = vcmp.ge.s32.totalorder %v32, 0
  %vm144 = vcmp.ge.s32.totalorder %v33, 0
  %vm145 = vcmp.ge.s32.totalorder %v34, 0
  %vm146 = vcmp.ge.s32.totalorder %v35, 0
  %v147 = vsel %vm143, 1, 0
  %v148 = vsel %vm144, 1, 0
  %v149 = vsel %vm145, 1, 0
  %v150 = vsel %vm146, 1, 0
  %v151 = vcvt.s32.f32 %v147
  %v152 = vcvt.s32.f32 %v148
  %v153 = vcvt.s32.f32 %v149
  %v154 = vcvt.s32.f32 %v150
  %v155 = vsub.f32 %v139, %v85
  %v156 = vsub.f32 %v140, %v88
  %v157 = vsub.f32 %v141, %v91
  %v158 = vsub.f32 %v142, %v94
  %v159 = vmul.f32 %v155, %v151
  %v160 = vmul.f32 %v156, %v152
  %v161 = vmul.f32 %v157, %v153
  %v162 = vmul.f32 %v158, %v154
  %v163 = vmul.f32 %v139, 8.0
  %v164 = vmul.f32 %v140, 8.0
  %v165 = vmul.f32 %v141, 8.0
  %v166 = vmul.f32 %v142, 8.0
  %v167 = vsub.f32 %v163, %v51
  %v168 = vsub.f32 %v164, %v54
  %v169 = vsub.f32 %v165, %v57
  %v170 = vsub.f32 %v166, %v60
  %171 = vxpose.xlu0.b32.start [1/16] %v159, 128
  %172 = vxpose.xlu0.b32.cont [2/16] %v160, 128
  %173 = vxpose.xlu0.b32.cont [3/16] %v161, 128
  %174 = vxpose.xlu0.b32.cont [4/16] %v162, 128
  %175 = vxpose.xlu0.b32.cont [5/16] 0.0, 128
  %176 = vxpose.xlu0.b32.cont [6/16] 0.0, 128
  %177 = vxpose.xlu0.b32.cont [7/16] 0.0, 128
  %178 = vxpose.xlu0.b32.cont [8/16] 0.0, 128
  %179 = vxpose.xlu0.b32.cont [9/16] 0.0, 128
  %180 = vxpose.xlu0.b32.cont [10/16] 0.0, 128
  %181 = vxpose.xlu0.b32.cont [11/16] 0.0, 128
  %182 = vxpose.xlu0.b32.cont [12/16] 0.0, 128
  %183 = vxpose.xlu0.b32.cont [13/16] 0.0, 128
  %184 = vxpose.xlu0.b32.cont [14/16] 0.0, 128
  %185 = vxpose.xlu0.b32.cont [15/16] 0.0, 128
  %186 = vxpose.xlu0.b32.end [16/16] 0.0, 128
  %v187 = vpop.trf.xlu0
  %v188 = vpop.trf.xlu0
  %v189 = vpop.trf.xlu0
  %v190 = vpop.trf.xlu0
  %v191 = vpop.trf.xlu0
  %v192 = vpop.trf.xlu0
  %v193 = vpop.trf.xlu0
  %v194 = vpop.trf.xlu0
  %v195 = vpop.trf.xlu0
  %v196 = vpop.trf.xlu0
  %v197 = vpop.trf.xlu0
  %v198 = vpop.trf.xlu0
  %v199 = vpop.trf.xlu0
  %v200 = vpop.trf.xlu0
  %v201 = vpop.trf.xlu0
  %v202 = vpop.trf.xlu0
  %vm203 = vcmask 253952
  %204 = vst.msk [vmem:[%s2] sm:$0x1] %vm203, %v187
  %205 = vxpose.xlu0.b32.start [1/16] %v167, 128
  %206 = vxpose.xlu0.b32.cont [2/16] %v168, 128
  %207 = vxpose.xlu0.b32.cont [3/16] %v169, 128
  %208 = vxpose.xlu0.b32.cont [4/16] %v170, 128
  %209 = vxpose.xlu0.b32.cont [5/16] 0.0, 128
  %210 = vxpose.xlu0.b32.cont [6/16] 0.0, 128
  %211 = vxpose.xlu0.b32.cont [7/16] 0.0, 128
  %212 = vxpose.xlu0.b32.cont [8/16] 0.0, 128
  %213 = vxpose.xlu0.b32.cont [9/16] 0.0, 128
  %214 = vxpose.xlu0.b32.cont [10/16] 0.0, 128
  %215 = vxpose.xlu0.b32.cont [11/16] 0.0, 128
  %216 = vxpose.xlu0.b32.cont [12/16] 0.0, 128
  %217 = vxpose.xlu0.b32.cont [13/16] 0.0, 128
  %218 = vxpose.xlu0.b32.cont [14/16] 0.0, 128
  %219 = vxpose.xlu0.b32.cont [15/16] 0.0, 128
  %220 = vxpose.xlu0.b32.end [16/16] 0.0, 128
  %v221 = vpop.trf.xlu0
  %v222 = vpop.trf.xlu0
  %v223 = vpop.trf.xlu0
  %v224 = vpop.trf.xlu0
  %v225 = vpop.trf.xlu0
  %v226 = vpop.trf.xlu0
  %v227 = vpop.trf.xlu0
  %v228 = vpop.trf.xlu0
  %v229 = vpop.trf.xlu0
  %v230 = vpop.trf.xlu0
  %v231 = vpop.trf.xlu0
  %v232 = vpop.trf.xlu0
  %v233 = vpop.trf.xlu0
  %v234 = vpop.trf.xlu0
  %v235 = vpop.trf.xlu0
  %v236 = vpop.trf.xlu0
  %237 = vst.msk [vmem:[%s2 + $0x1] sm:$0x1] %vm203, %v221
  // Predicated region
  $region10: #{ohem_cross_entropy.1} parent=0 // pred_check
    _
  $region11: #{ohem_cross_entropy.1} parent=0 // pred_check_branch
    %239 = sbr.rel (0) target = $region13
  $region12: #{ohem_cross_entropy.1} parent=0 // pred_region
    _
  $region13: #{ohem_cross_entropy.1} parent=0 // pred_fallthru
    _
  // Predicated region
  $region14: #{ohem_cross_entropy.1} parent=0 // pred_check
    _
  $region15: #{ohem_cross_entropy.1} parent=0 // pred_check_branch
    %241 = sbr.rel (0) target = $region17
  $region16: #{ohem_cross_entropy.1} parent=0 // pred_region
    _
  $region17: #{ohem_cross_entropy.1} parent=0 // pred_fallthru
    _

</llo_original>
